<compile_context>
chip_gen: v5e
topology: v5e:2x2
jax: 0.10.0
libtpu: 0.0.40
codegen_flags: <defaults>
</compile_context>

<pallas_src>
import functools

import jax
import jax.numpy as jnp
from jax import lax
from jax.experimental import pallas as pl
from jax.experimental.pallas import tpu as pltpu


def _round_up(x, q):
    return ((x + q - 1) // q) * q


# ----------------------------------------------------------------------------
# Kernel 1: MLM-backbone stand-in, tiled over (row tiles, vocab tiles), with
# the per-row MLM NLL fused via online logsumexp over masked vocab tiles.
# TODO(synk): the real module calls an arbitrary HuggingFace MLM model
# (self.model); it has no clean single-kernel Pallas equivalent, so it is
# replaced by a deterministic 1-layer encoder with identical output shapes.
# ----------------------------------------------------------------------------
def _encoder_kernel(V, x_ref, w1_ref, b1_ref, wv_ref, lab_ref,
                    h_ref, logits_ref, nll_ref,
                    h_bf, m_acc, l_acc, t_acc):
    j = pl.program_id(1)
    nj = pl.num_programs(1)
    tn = logits_ref.shape[-1]

    @pl.when(j == 0)
    def _():
        # hidden = tanh(x @ W1 + b1): bf16 MXU operands, f32 accumulation.
        # Computed once per row tile; f32 copy goes to the resident output
        # block, bf16 copy is cached in VMEM scratch so every vocab step below
        # feeds the MXU without an f32 reload + cast (review item).
        h32 = jnp.tanh(
            jnp.dot(x_ref[...], w1_ref[...],
                    preferred_element_type=jnp.float32) + b1_ref[...])
        h_ref[...] = h32
        h_bf[...] = h32.astype(jnp.bfloat16)
        m_acc[...] = jnp.full_like(m_acc, -jnp.inf)
        l_acc[...] = jnp.zeros_like(l_acc)
        t_acc[...] = jnp.zeros_like(t_acc)

    logits = jnp.dot(h_bf[...], wv_ref[...],
                     preferred_element_type=jnp.float32)        # [tm, tn] f32
    logits_ref[...] = logits.astype(logits_ref.dtype)           # bf16 store

    # Column ids for this vocab tile; the last tile may extend past V
    # (cdiv grid) -> mask padded columns out of the logsumexp.
    col = lax.broadcasted_iota(jnp.int32, logits.shape, 1) + j * tn
    masked = jnp.where(col < V, logits, -jnp.inf)

    # Fused MLM cross-entropy: online logsumexp over vocab tiles.
    m_new = jnp.maximum(m_acc[...], jnp.max(masked, axis=-1, keepdims=True))
    l_acc[...] = (l_acc[...] * jnp.exp(m_acc[...] - m_new)
                  + jnp.sum(jnp.exp(masked - m_new), axis=-1, keepdims=True))
    m_acc[...] = m_new

    # Target-logit gather via iota compare (labels sanitised to [0, V) in the
    # wrapper, so padded columns can never match).
    t_acc[...] += jnp.sum(jnp.where(col == lab_ref[...], logits, 0.0),
                          axis=-1, keepdims=True)

    @pl.when(j == nj - 1)
    def _():
        nll_ref[...] = (m_acc[...] + jnp.log(l_acc[...])) - t_acc[...]


def encoder_pallas(x, w1, b1, wv, safe_labels, *, max_tm=512, max_tn=2048,
                   logits_dtype=jnp.bfloat16):
    """x:[N,H] bf16, w1:[H,H] bf16, b1:[1,H] f32, wv:[H,V] bf16, labels:[N]."""
    N, H = x.shape
    V = wv.shape[1]
    # Tiles no longer need to divide N / V: partial tiles are masked in-kernel
    # and partial output blocks are clipped by Pallas on writeback.
    tm = min(max_tm, _round_up(N, 8))        # multiple of 8 (sublane quantum)
    tn = min(max_tn, _round_up(V, 128))      # multiple of 128 (lane quantum)
    grid = (pl.cdiv(N, tm), pl.cdiv(V, tn))
    lab = safe_labels.astype(jnp.int32).reshape(N, 1)

    # VMEM budget from actual tile sizes (double-buffered in/out + scratch),
    # capped at the v7x-safe 64 MiB (review item).
    lbytes = jnp.dtype(logits_dtype).itemsize
    est = (2 * (tm * H * 2        # x tile (bf16)
                + H * H * 2       # W1 (bf16)
                + H * 4           # b1 (f32)
                + H * tn * 2      # Wv vocab tile (bf16)
                + tm * 4          # labels (i32)
                + tm * H * 4      # hidden out (f32)
                + tm * tn * lbytes  # logits out
                + tm * 4)         # nll out (f32)
           + tm * H * 2 + 3 * tm * 4)  # scratch: h_bf + m/l/t accumulators
    vmem_limit = int(min(64 * 2**20, max(32 * 2**20, est * 1.5 + 4 * 2**20)))

    return pl.pallas_call(
        functools.partial(_encoder_kernel, V),
        out_shape=(
            jax.ShapeDtypeStruct((N, H), jnp.float32),   # last hidden state
            jax.ShapeDtypeStruct((N, V), logits_dtype),  # pred_scores logits
            jax.ShapeDtypeStruct((N, 1), jnp.float32),   # per-row MLM NLL
        ),
        grid_spec=pltpu.PrefetchScalarGridSpec(
            num_scalar_prefetch=0,
            grid=grid,
            in_specs=[
                pl.BlockSpec((tm, H), lambda i, j: (i, 0)),    # x rows
                pl.BlockSpec((H, H), lambda i, j: (0, 0)),     # W1 (resident)
                pl.BlockSpec((1, H), lambda i, j: (0, 0)),     # b1 (resident)
                pl.BlockSpec((H, tn), lambda i, j: (0, j)),    # Wv vocab tile
                pl.BlockSpec((tm, 1), lambda i, j: (i, 0)),    # labels
            ],
            out_specs=(
                pl.BlockSpec((tm, H), lambda i, j: (i, 0)),    # hidden (resident)
                pl.BlockSpec((tm, tn), lambda i, j: (i, j)),   # logits
                pl.BlockSpec((tm, 1), lambda i, j: (i, 0)),    # nll (resident)
            ),
            scratch_shapes=[
                pltpu.VMEM((tm, H), jnp.bfloat16),  # cached bf16 hidden
                pltpu.VMEM((tm, 1), jnp.float32),   # running max
                pltpu.VMEM((tm, 1), jnp.float32),   # running sum(exp)
                pltpu.VMEM((tm, 1), jnp.float32),   # target logit accumulator
            ],
        ),
        compiler_params=pltpu.CompilerParams(
            # Row axis is independent -> megacore-shardable on v7x (keep it
            # first and ensure N/tm >= 2 for both TCs to get work); vocab axis
            # is the fused reduction -> arbitrary, last in the grid.
            dimension_semantics=("parallel", "arbitrary"),
            vmem_limit_bytes=vmem_limit,
        ),
    )(x, w1, b1, wv, lab)


# ----------------------------------------------------------------------------
# Contrastive cosine / temp + cross-entropy (cl_loss). Plain XLA by design:
# at (B, num_label) the tensors are far below one (8,128) vreg tile and a
# Pallas launch would cost more than the compute (perf-review item).
# Matches torch.nn.CosineSimilarity eps semantics (per-norm clamp at 1e-8).
# ----------------------------------------------------------------------------
def cl_loss_jax(mask_rep, cl_rep, labels, temp):
    x = mask_rep.astype(jnp.float32)                            # [M, H]
    y = cl_rep.astype(jnp.float32)                              # [C, H]
    eps = 1e-8
    xn = jnp.maximum(jnp.sqrt(jnp.sum(x * x, -1, keepdims=True)), eps)
    yn = jnp.maximum(jnp.sqrt(jnp.sum(y * y, -1, keepdims=True)), eps)
    cos = (x @ y.T) / (xn * yn.T) / temp                        # [M, C]
    logp = jax.nn.log_softmax(cos, axis=-1)
    tgt = jnp.take_along_axis(logp, labels.astype(jnp.int32)[:, None], axis=1)
    return -jnp.mean(tgt)


# ----------------------------------------------------------------------------
# ModelForPrompt.forward
# ----------------------------------------------------------------------------
def model_for_prompt_forward(params, config, input_ids, attention_mask,
                             mlm_labels, labels, cl_examples=None,
                             max_tm=512, max_tn=2048,
                             logits_dtype=jnp.bfloat16):
    B, L = mlm_labels.shape
    H = params["embed"].shape[1]
    del attention_mask  # all-ones mask; the stand-in encoder is per-token

    flat_ids = input_ids.reshape(-1)
    flat_mlm = mlm_labels.reshape(-1)
    valid = (flat_mlm != -100)
    safe_labels = jnp.where(valid, flat_mlm, 0).astype(jnp.int32)

    # bf16 operand feed for the MXU (accumulation stays f32 in the kernel).
    # TODO(synk): fuse this embedding gather into kernel 1 via scalar-prefetched
    # row indices (P2 pattern); secondary to the Wv/logits HBM traffic.
    x = params["embed"].astype(jnp.bfloat16)[flat_ids]            # [B*L, H]

    hidden_flat, logits_flat, nll = encoder_pallas(
        x,
        params["w1"].astype(jnp.bfloat16),
        params["b1"].astype(jnp.float32),
        params["wv"].astype(jnp.bfloat16),
        safe_labels,
        max_tm=max_tm, max_tn=max_tn, logits_dtype=logits_dtype)

    last_hidden = hidden_flat.reshape(B, L, H)
    pred_scores = logits_flat.reshape(B, L, -1)

    # MLM loss: CrossEntropyLoss(ignore_index=-100, reduction='mean').
    # 0/0 -> NaN when every label is -100, matching torch.
    vf = valid.astype(jnp.float32)
    mlm_loss = jnp.sum(nll[:, 0] * vf) / jnp.sum(vf)

    hidden_states = (last_hidden,)                                # last = [-1]

    if cl_examples is not None:
        # mask_rep = last_hidden[mlm_labels != -100]; exactly one mask / row.
        pos = jnp.argmax(valid.reshape(B, L).astype(jnp.int32), axis=1)
        mask_rep = last_hidden[jnp.arange(B), pos]                # [M=B, H]
        cl_loss = cl_loss_jax(mask_rep, cl_examples, labels, config["cl_temp"])
        return mlm_loss, pred_scores, hidden_states, cl_loss
    return mlm_loss, pred_scores, hidden_states


if __name__ == "__main__":
    # Small, deterministic shapes consistent with the module. L=9 and V=320
    # deliberately do NOT divide the tile caps below, so the demo exercises
    # the masked partial-row-tile and partial-vocab-tile paths.
    B, L, H, V = 2, 9, 32, 320
    config = {"cl_temp": 0.05, "num_label": 4, "num_k": 2}

    key = jax.random.PRNGKey(0)
    ks = jax.random.split(key, 10)

    params = {
        "embed": 0.1 * jax.random.normal(ks[0], (V, H), jnp.float32),
        "w1": 0.2 * jax.random.normal(ks[1], (H, H), jnp.float32),
        "b1": jnp.zeros((1, H), jnp.float32),
        "wv": 0.2 * jax.random.normal(ks[2], (H, V), jnp.float32),
    }
    # Parity with __init__ (torch.rand buffers); unused in forward.
    cl_pos_embedding = jax.random.uniform(
        ks[3], (config["num_k"] * config["num_label"], H), jnp.float32)
    cl_neg_embedding = jax.random.uniform(
        ks[4], (config["num_k"] * config["num_label"], H), jnp.float32)

    input_ids = jax.random.randint(ks[5], (B, L), 0, V, dtype=jnp.int32)
    attention_mask = jnp.ones((B, L), jnp.int32)
    mask_pos = jnp.array([3, 5], dtype=jnp.int32)                 # one [MASK]/row
    mlm_targets = jax.random.randint(ks[6], (B,), 0, V, dtype=jnp.int32)
    mlm_labels = jnp.full((B, L), -100, jnp.int32)
    mlm_labels = mlm_labels.at[jnp.arange(B), mask_pos].set(mlm_targets)
    labels = jax.random.randint(ks[7], (B,), 0, config["num_label"],
                                dtype=jnp.int32)
    cl_examples = jax.random.normal(ks[8], (config["num_label"], H),
                                    jnp.float32)

    # Small tile caps so the demo exercises the real (N, V) grid:
    # N=18, tm=8 -> 3 row tiles (last partial); V=320, tn=128 -> 3 vocab tiles
    # (last partial, masked online-logsumexp path).
    out = model_for_prompt_forward(params, config, input_ids, attention_mask,
                                   mlm_labels, labels, cl_examples,
                                   max_tm=8, max_tn=128)
    jax.block_until_ready(out)
    mlm_loss, pred_scores, hidden_states, cl_loss = out
    assert pred_scores.shape == (B, L, V)
    assert hidden_states[-1].shape == (B, L, H)
    assert mlm_loss.shape == () and cl_loss.shape == ()

    # ---- pure-JAX reference (same bf16 operand convention) ------------------
    xb = params["embed"].astype(jnp.bfloat16)[input_ids.reshape(-1)]
    h_ref = jnp.tanh(jnp.dot(xb, params["w1"].astype(jnp.bfloat16),
                             preferred_element_type=jnp.float32)
                     + params["b1"])
    logits_ref = jnp.dot(h_ref.astype(jnp.bfloat16),
                         params["wv"].astype(jnp.bfloat16),
                         preferred_element_type=jnp.float32)
    flat_lab = mlm_labels.reshape(-1)
    valid = (flat_lab != -100)
    safe = jnp.where(valid, flat_lab, 0)
    logp = jax.nn.log_softmax(logits_ref, axis=-1)
    nll_ref = -jnp.take_along_axis(logp, safe[:, None], axis=1)[:, 0]
    vf = valid.astype(jnp.float32)
    mlm_ref = jnp.sum(nll_ref * vf) / jnp.sum(vf)
    pos = jnp.argmax(valid.reshape(B, L).astype(jnp.int32), axis=1)
    mrep = h_ref.reshape(B, L, H)[jnp.arange(B), pos]
    xn = jnp.maximum(jnp.sqrt(jnp.sum(mrep * mrep, -1, keepdims=True)), 1e-8)
    yn = jnp.maximum(jnp.sqrt(jnp.sum(cl_examples * cl_examples, -1,
                                      keepdims=True)), 1e-8)
    cos = (mrep @ cl_examples.T) / (xn * yn.T) / config["cl_temp"]
    cl_ref = jnp.mean(jax.nn.logsumexp(cos, axis=-1)
                      - cos[jnp.arange(B), labels])

    # pred_scores are bf16 by design (halves the dominant HBM writeback).
    assert jnp.allclose(pred_scores.reshape(-1, V).astype(jnp.float32),
                        logits_ref, rtol=2e-2, atol=2e-2)
    assert jnp.allclose(hidden_states[-1].reshape(-1, H), h_ref,
                        rtol=1e-2, atol=1e-2)
    assert jnp.allclose(mlm_loss, mlm_ref, rtol=1e-2, atol=1e-2)
    assert jnp.allclose(cl_loss, cl_ref, rtol=1e-2, atol=1e-2)
    print("KERNEL_OK")
</pallas_src>

<mosaic_0001>
module attributes {stable_mosaic.version = 11 : i64} {
  func.func @_encoder_kernel(%arg0: i32, %arg1: i32, %arg2: memref<8x32xbf16, #tpu.memory_space<vmem>>, %arg3: memref<32x32xbf16, #tpu.memory_space<vmem>>, %arg4: memref<1x32xf32, #tpu.memory_space<vmem>>, %arg5: memref<32x128xbf16, #tpu.memory_space<vmem>>, %arg6: memref<8x1xi32, #tpu.memory_space<vmem>>, %arg7: memref<8x32xf32, #tpu.memory_space<vmem>>, %arg8: memref<8x128xbf16, #tpu.memory_space<vmem>>, %arg9: memref<8x1xf32, #tpu.memory_space<vmem>>, %arg10: memref<8x32xbf16, #tpu.memory_space<vmem>>, %arg11: memref<8x1xf32, #tpu.memory_space<vmem>>, %arg12: memref<8x1xf32, #tpu.memory_space<vmem>>, %arg13: memref<8x1xf32, #tpu.memory_space<vmem>>) attributes {dimension_semantics = [#tpu.dimension_semantics<parallel>, #tpu.dimension_semantics<arbitrary>], iteration_bounds = array<i64: 3, 3>, scalar_prefetch = 0 : i64, scratch_operands = 4 : i64, tpu.core_type = #tpu.core_type<tc>, window_params = [{transform_indices = @transform_0, window_bounds = array<i64: 8, 32>}, {pipeline_mode = #tpu.pipeline_mode<synchronous>, transform_indices = @transform_1, window_bounds = array<i64: 32, 32>}, {pipeline_mode = #tpu.pipeline_mode<synchronous>, transform_indices = @transform_2, window_bounds = array<i64: 1, 32>}, {transform_indices = @transform_3, window_bounds = array<i64: 32, 128>}, {transform_indices = @transform_4, window_bounds = array<i64: 8, 1>}, {transform_indices = @transform_5, window_bounds = array<i64: 8, 32>}, {transform_indices = @transform_6, window_bounds = array<i64: 8, 128>}, {transform_indices = @transform_7, window_bounds = array<i64: 8, 1>}]} {
    %c0_i32 = arith.constant 0 : i32
    %0 = arith.cmpi eq, %arg1, %c0_i32 : i32
    %1 = arith.extui %0 : i1 to i32
    %c0_i32_0 = arith.constant 0 : i32
    %2 = arith.cmpi ne, %1, %c0_i32_0 : i32
    scf.if %2 {
      %c0_28 = arith.constant 0 : index
      %c0_29 = arith.constant 0 : index
      %46 = vector.load %arg2[%c0_28, %c0_29] : memref<8x32xbf16, #tpu.memory_space<vmem>>, vector<8x32xbf16>
      %c0_30 = arith.constant 0 : index
      %c0_31 = arith.constant 0 : index
      %47 = vector.load %arg3[%c0_30, %c0_31] : memref<32x32xbf16, #tpu.memory_space<vmem>>, vector<32x32xbf16>
      %cst_32 = arith.constant dense<0.000000e+00> : vector<8x32xf32>
      %48 = tpu.matmul %46, %47, %cst_32 {dimension_numbers = #tpu.dot_dimension_numbers<[1], [0], [0], [1], [0, 0, 1, 1], [], []>} : vector<8x32xbf16>, vector<32x32xbf16>, vector<8x32xf32> -> vector<8x32xf32>
      %c0_33 = arith.constant 0 : index
      %c0_34 = arith.constant 0 : index
      %49 = vector.load %arg4[%c0_33, %c0_34] : memref<1x32xf32, #tpu.memory_space<vmem>>, vector<1x32xf32>
      %50 = vector.broadcast %49 : vector<1x32xf32> to vector<8x32xf32>
      %51 = arith.addf %48, %50 : vector<8x32xf32>
      %52 = math.tanh %51 : vector<8x32xf32>
      %c0_35 = arith.constant 0 : index
      %c0_36 = arith.constant 0 : index
      %53 = vector.load %arg7[%c0_35, %c0_36] : memref<8x32xf32, #tpu.memory_space<vmem>>, vector<8x32xf32>
      tpu.vector_store %arg7[%c0_35, %c0_36], %52 {strides = array<i32>} : memref<8x32xf32, #tpu.memory_space<vmem>>, vector<8x32xf32>,
      %54 = arith.truncf %52 : vector<8x32xf32> to vector<8x32xbf16>
      %c0_37 = arith.constant 0 : index
      %c0_38 = arith.constant 0 : index
      %55 = vector.load %arg10[%c0_37, %c0_38] : memref<8x32xbf16, #tpu.memory_space<vmem>>, vector<8x32xbf16>
      tpu.vector_store %arg10[%c0_37, %c0_38], %54 {strides = array<i32>} : memref<8x32xbf16, #tpu.memory_space<vmem>>, vector<8x32xbf16>,
      %cst_39 = arith.constant 0xFF800000 : f32
      %56 = vector.broadcast %cst_39 : f32 to vector<8x1xf32>
      %c0_40 = arith.constant 0 : index
      %c0_41 = arith.constant 0 : index
      %57 = vector.load %arg11[%c0_40, %c0_41] : memref<8x1xf32, #tpu.memory_space<vmem>>, vector<8x1xf32>
      tpu.vector_store %arg11[%c0_40, %c0_41], %56 {strides = array<i32>} : memref<8x1xf32, #tpu.memory_space<vmem>>, vector<8x1xf32>,
      %cst_42 = arith.constant 0.000000e+00 : f32
      %58 = vector.broadcast %cst_42 : f32 to vector<8x1xf32>
      %c0_43 = arith.constant 0 : index
      %c0_44 = arith.constant 0 : index
      %59 = vector.load %arg12[%c0_43, %c0_44] : memref<8x1xf32, #tpu.memory_space<vmem>>, vector<8x1xf32>
      tpu.vector_store %arg12[%c0_43, %c0_44], %58 {strides = array<i32>} : memref<8x1xf32, #tpu.memory_space<vmem>>, vector<8x1xf32>,
      %cst_45 = arith.constant 0.000000e+00 : f32
      %60 = vector.broadcast %cst_45 : f32 to vector<8x1xf32>
      %c0_46 = arith.constant 0 : index
      %c0_47 = arith.constant 0 : index
      %61 = vector.load %arg13[%c0_46, %c0_47] : memref<8x1xf32, #tpu.memory_space<vmem>>, vector<8x1xf32>
      tpu.vector_store %arg13[%c0_46, %c0_47], %60 {strides = array<i32>} : memref<8x1xf32, #tpu.memory_space<vmem>>, vector<8x1xf32>,
    } else {
    }
    %c0 = arith.constant 0 : index
    %c0_1 = arith.constant 0 : index
    %3 = vector.load %arg10[%c0, %c0_1] : memref<8x32xbf16, #tpu.memory_space<vmem>>, vector<8x32xbf16>
    %c0_2 = arith.constant 0 : index
    %c0_3 = arith.constant 0 : index
    %4 = vector.load %arg5[%c0_2, %c0_3] : memref<32x128xbf16, #tpu.memory_space<vmem>>, vector<32x128xbf16>
    %cst = arith.constant dense<0.000000e+00> : vector<8x128xf32>
    %5 = tpu.matmul %3, %4, %cst {dimension_numbers = #tpu.dot_dimension_numbers<[1], [0], [0], [1], [0, 0, 1, 1], [], []>} : vector<8x32xbf16>, vector<32x128xbf16>, vector<8x128xf32> -> vector<8x128xf32>
    %6 = arith.truncf %5 : vector<8x128xf32> to vector<8x128xbf16>
    %c0_4 = arith.constant 0 : index
    %c0_5 = arith.constant 0 : index
    %7 = vector.load %arg8[%c0_4, %c0_5] : memref<8x128xbf16, #tpu.memory_space<vmem>>, vector<8x128xbf16>
    tpu.vector_store %arg8[%c0_4, %c0_5], %6 {strides = array<i32>} : memref<8x128xbf16, #tpu.memory_space<vmem>>, vector<8x128xbf16>,
    %8 = tpu.iota {dimensions = array<i32: 1>} : vector<8x128xi32>
    %c128_i32 = arith.constant 128 : i32
    %9 = arith.muli %arg1, %c128_i32 : i32
    %10 = vector.broadcast %9 : i32 to vector<8x128xi32>
    %11 = arith.addi %8, %10 : vector<8x128xi32>
    %c320_i32 = arith.constant 320 : i32
    %12 = vector.broadcast %c320_i32 : i32 to vector<8x128xi32>
    %13 = arith.cmpi slt, %11, %12 : vector<8x128xi32>
    %cst_6 = arith.constant 0xFF800000 : f32
    %14 = vector.broadcast %cst_6 : f32 to vector<8x128xf32>
    %15 = arith.select %13, %5, %14 : vector<8x128xi1>, vector<8x128xf32>
    %c0_7 = arith.constant 0 : index
    %c0_8 = arith.constant 0 : index
    %16 = vector.load %arg11[%c0_7, %c0_8] : memref<8x1xf32, #tpu.memory_space<vmem>>, vector<8x1xf32>
    %cst_9 = arith.constant dense<0xFF800000> : vector<8xf32>
    %17 = vector.multi_reduction <maximumf>, %15, %cst_9 [1] : vector<8x128xf32> to vector<8xf32>
    %18 = vector.shape_cast %17 : vector<8xf32> to vector<8x1xf32>
    %19 = arith.maximumf %16, %18 : vector<8x1xf32>
    %c0_10 = arith.constant 0 : index
    %c0_11 = arith.constant 0 : index
    %20 = vector.load %arg12[%c0_10, %c0_11] : memref<8x1xf32, #tpu.memory_space<vmem>>, vector<8x1xf32>
    %c0_12 = arith.constant 0 : index
    %c0_13 = arith.constant 0 : index
    %21 = vector.load %arg11[%c0_12, %c0_13] : memref<8x1xf32, #tpu.memory_space<vmem>>, vector<8x1xf32>
    %22 = arith.subf %21, %19 : vector<8x1xf32>
    %23 = math.exp %22 : vector<8x1xf32>
    %24 = arith.mulf %20, %23 : vector<8x1xf32>
    %25 = vector.broadcast %19 : vector<8x1xf32> to vector<8x128xf32>
    %26 = arith.subf %15, %25 : vector<8x128xf32>
    %27 = math.exp %26 : vector<8x128xf32>
    %cst_14 = arith.constant dense<0.000000e+00> : vector<8xf32>
    %28 = vector.multi_reduction <add>, %27, %cst_14 [1] : vector<8x128xf32> to vector<8xf32>
    %29 = vector.shape_cast %28 : vector<8xf32> to vector<8x1xf32>
    %30 = arith.addf %24, %29 : vector<8x1xf32>
    %c0_15 = arith.constant 0 : index
    %c0_16 = arith.constant 0 : index
    %31 = vector.load %arg12[%c0_15, %c0_16] : memref<8x1xf32, #tpu.memory_space<vmem>>, vector<8x1xf32>
    tpu.vector_store %arg12[%c0_15, %c0_16], %30 {strides = array<i32>} : memref<8x1xf32, #tpu.memory_space<vmem>>, vector<8x1xf32>,
    %c0_17 = arith.constant 0 : index
    %c0_18 = arith.constant 0 : index
    %32 = vector.load %arg11[%c0_17, %c0_18] : memref<8x1xf32, #tpu.memory_space<vmem>>, vector<8x1xf32>
    tpu.vector_store %arg11[%c0_17, %c0_18], %19 {strides = array<i32>} : memref<8x1xf32, #tpu.memory_space<vmem>>, vector<8x1xf32>,
    %c0_19 = arith.constant 0 : index
    %c0_20 = arith.constant 0 : index
    %33 = vector.load %arg13[%c0_19, %c0_20] : memref<8x1xf32, #tpu.memory_space<vmem>>, vector<8x1xf32>
    %c0_21 = arith.constant 0 : index
    %c0_22 = arith.constant 0 : index
    %34 = vector.load %arg6[%c0_21, %c0_22] : memref<8x1xi32, #tpu.memory_space<vmem>>, vector<8x1xi32>
    %35 = vector.broadcast %34 : vector<8x1xi32> to vector<8x128xi32>
    %36 = arith.cmpi eq, %11, %35 : vector<8x128xi32>
    %cst_23 = arith.constant 0.000000e+00 : f32
    %37 = vector.broadcast %cst_23 : f32 to vector<8x128xf32>
    %38 = arith.select %36, %5, %37 : vector<8x128xi1>, vector<8x128xf32>
    %cst_24 = arith.constant dense<0.000000e+00> : vector<8xf32>
    %39 = vector.multi_reduction <add>, %38, %cst_24 [1] : vector<8x128xf32> to vector<8xf32>
    %40 = vector.shape_cast %39 : vector<8xf32> to vector<8x1xf32>
    %41 = arith.addf %33, %40 : vector<8x1xf32>
    %c0_25 = arith.constant 0 : index
    %c0_26 = arith.constant 0 : index
    %42 = vector.load %arg13[%c0_25, %c0_26] : memref<8x1xf32, #tpu.memory_space<vmem>>, vector<8x1xf32>
    tpu.vector_store %arg13[%c0_25, %c0_26], %41 {strides = array<i32>} : memref<8x1xf32, #tpu.memory_space<vmem>>, vector<8x1xf32>,
    %c2_i32 = arith.constant 2 : i32
    %43 = arith.cmpi eq, %arg1, %c2_i32 : i32
    %44 = arith.extui %43 : i1 to i32
    %c0_i32_27 = arith.constant 0 : i32
    %45 = arith.cmpi ne, %44, %c0_i32_27 : i32
    scf.if %45 {
      %c0_28 = arith.constant 0 : index
      %c0_29 = arith.constant 0 : index
      %46 = vector.load %arg11[%c0_28, %c0_29] : memref<8x1xf32, #tpu.memory_space<vmem>>, vector<8x1xf32>
      %c0_30 = arith.constant 0 : index
      %c0_31 = arith.constant 0 : index
      %47 = vector.load %arg12[%c0_30, %c0_31] : memref<8x1xf32, #tpu.memory_space<vmem>>, vector<8x1xf32>
      %48 = math.log %47 : vector<8x1xf32>
      %49 = arith.addf %46, %48 : vector<8x1xf32>
      %c0_32 = arith.constant 0 : index
      %c0_33 = arith.constant 0 : index
      %50 = vector.load %arg13[%c0_32, %c0_33] : memref<8x1xf32, #tpu.memory_space<vmem>>, vector<8x1xf32>
      %51 = arith.subf %49, %50 : vector<8x1xf32>
      %c0_34 = arith.constant 0 : index
      %c0_35 = arith.constant 0 : index
      %52 = vector.load %arg9[%c0_34, %c0_35] : memref<8x1xf32, #tpu.memory_space<vmem>>, vector<8x1xf32>
      tpu.vector_store %arg9[%c0_34, %c0_35], %51 {strides = array<i32>} : memref<8x1xf32, #tpu.memory_space<vmem>>, vector<8x1xf32>,
    } else {
    }
    return
  }
  func.func @transform_0(%arg0: i32, %arg1: i32) -> (i32, i32) {
    %c0_i32 = arith.constant 0 : i32
    %c0_i32_0 = arith.constant 0 : i32
    return %arg0, %c0_i32 : i32, i32
  }
  func.func @transform_1(%arg0: i32, %arg1: i32) -> (i32, i32) {
    %c0_i32 = arith.constant 0 : i32
    %c0_i32_0 = arith.constant 0 : i32
    %c0_i32_1 = arith.constant 0 : i32
    return %c0_i32, %c0_i32_0 : i32, i32
  }
  func.func @transform_2(%arg0: i32, %arg1: i32) -> (i32, i32) {
    %c0_i32 = arith.constant 0 : i32
    %c0_i32_0 = arith.constant 0 : i32
    %c0_i32_1 = arith.constant 0 : i32
    return %c0_i32, %c0_i32_0 : i32, i32
  }
  func.func @transform_3(%arg0: i32, %arg1: i32) -> (i32, i32) {
    %c0_i32 = arith.constant 0 : i32
    %c0_i32_0 = arith.constant 0 : i32
    return %c0_i32, %arg1 : i32, i32
  }
  func.func @transform_4(%arg0: i32, %arg1: i32) -> (i32, i32) {
    %c0_i32 = arith.constant 0 : i32
    %c0_i32_0 = arith.constant 0 : i32
    return %arg0, %c0_i32 : i32, i32
  }
  func.func @transform_5(%arg0: i32, %arg1: i32) -> (i32, i32) {
    %c0_i32 = arith.constant 0 : i32
    %c0_i32_0 = arith.constant 0 : i32
    return %arg0, %c0_i32 : i32, i32
  }
  func.func @transform_6(%arg0: i32, %arg1: i32) -> (i32, i32) {
    %c0_i32 = arith.constant 0 : i32
    return %arg0, %arg1 : i32, i32
  }
  func.func @transform_7(%arg0: i32, %arg1: i32) -> (i32, i32) {
    %c0_i32 = arith.constant 0 : i32
    %c0_i32_0 = arith.constant 0 : i32
    return %arg0, %c0_i32 : i32, i32
  }
}

</mosaic_0001>

<llo_original>
// kernel: tpu_custom_call.1
$region0: #{tpu_custom_call.1}
  #allocation0 [shape = 'u32[]', space=smem, size = 0x4, offset = 0x4, fixed_abs, tag = 'smem constant byte address 0x4 - core index']
  #allocation1 [shape = 'u32[72,128]{1,0:T(1,128)}', space=vmem, size = 0x9000, scoped, tag = 'internal scratch']
  #allocation2 [shape = 'bf16[8,32]{1,0:T(8,128)(2,1)}', space=vmem, size = 0x800, scoped, tag = 'scratch operand']
  #allocation3 [shape = 'f32[8,1]{1,0:T(8,128)}', space=vmem, size = 0x1000, scoped, tag = 'scratch operand']
  #allocation4 [shape = 'f32[8,1]{1,0:T(8,128)}', space=vmem, size = 0x1000, scoped, tag = 'scratch operand']
  #allocation5 [shape = 'f32[8,1]{1,0:T(8,128)}', space=vmem, size = 0x1000, scoped, tag = 'scratch operand']
  %s0 = inlined_call_operand.hbm [shape: bf16[18,32], index: 0, kind: input, shape index: {}]
  %s1 = inlined_call_operand.vmem [shape: bf16[32,32], index: 1, kind: input, shape index: {}]
  %s2 = inlined_call_operand.vmem [shape: f32[1,32], index: 2, kind: input, shape index: {}]
  %s3 = inlined_call_operand.hbm [shape: bf16[32,320], index: 3, kind: input, shape index: {}]
  %s4 = inlined_call_operand.vmem [shape: s32[18,1], index: 4, kind: input, shape index: {}]
  %s5 = inlined_call_operand.hbm [shape: f32[18,32], index: 5, kind: output, shape index: {0}]
  %s6 = inlined_call_operand.hbm [shape: bf16[18,320], index: 6, kind: output, shape index: {1}]
  %s7 = inlined_call_operand.vmem [shape: f32[18,1], index: 7, kind: output, shape index: {2}]
  %8 = xla_tuple %s5, %s6, %s7
  %s9 = sld [smem:[#allocation0]]
  $region85: #{tpu_custom_call.1} parent=0
    _
  %s11 = ssub.s32 1, %s9
  %s12 = scalar_select 0, %s11, %s9
  $region1: #{tpu_custom_call.1} parent=0
    #allocation6 [shape = 'u8[4096]{0}', space=vmem, size = 0x1000, scoped, tag = 'input window, operand 0']
    #allocation7 [shape = 's32[2]{0}', space=sflag, size = 0x8, scoped, tag = 'scoped memory for tpu_custom_call.1']
    #allocation8 [shape = 's32[2]{0}', space=sflag, size = 0x8, scoped, tag = 'scoped memory for tpu_custom_call.1']
    #allocation9 [shape = 'u8[16384]{0}', space=vmem, size = 0x4000, scoped, tag = 'input window, operand 3']
    #allocation10 [shape = 's32[2]{0}', space=sflag, size = 0x8, scoped, tag = 'scoped memory for tpu_custom_call.1']
    #allocation11 [shape = 'u8[8192]{0}', space=vmem, size = 0x2000, scoped, tag = 'output window, operand 0']
    #allocation12 [shape = 'u8[4096]{0}', space=vmem, size = 0x1000, scoped, tag = 'output window, operand 1']
    #allocation13 [shape = 's32[2]{0}', space=sflag, size = 0x8, scoped, tag = 'scoped memory for tpu_custom_call.1']
    %13 = vsyncpa [#allocation7], 0
    %s14 = scalar_lea.sflag [#allocation7], 1
    %15 = vsyncpa %s14, 0
    %16 = vsyncpa [#allocation10], 0
    %s17 = scalar_lea.sflag [#allocation10], 1
    %18 = vsyncpa %s17, 0
    %19 = vsyncpa [#allocation8], 0
    %s20 = scalar_lea.sflag [#allocation8], 1
    %21 = vsyncpa %s20, 0
    %22 = vsyncpa [#allocation13], 0
    %s23 = scalar_lea.sflag [#allocation13], 1
    %24 = vsyncpa %s23, 0
    loop: start=0, step=1, limit=11
    $region2: #{tpu_custom_call.1} parent=1 // loop_pre_header
      _
    $region3: #{tpu_custom_call.1} parent=1 // loop_header
      %s26 = sphi 0, %s30
      %p27 = scmp.ge.s32.totalorder %s26, 11
      %s33 = sphi 0, %s45
      %s34 = sphi 0, %s41
      %s35 = sphi 0, %s33
      %s36 = sphi 0, %s34
      %s37 = sphi 0, %s35
      %s38 = sphi 0, %s36
      %s48 = sphi 0, %s50
      %s51 = sphi 0, %s48
      %s52 = sphi 0, %s51
      %s68 = sphi 0, %s52
      %s72 = sphi 0, %s72
      %s74 = sphi 0, %s72
      %s75 = sphi 0, %s74
      %s89 = sphi 0, %s75
      %s93 = sphi 0, %s93
      %s95 = sphi 0, %s93
      %s96 = sphi 0, %s95
      %s110 = sphi 0, %s96
      %s116 = sphi 0, %s118
      %s119 = sphi 0, %s116
      %s120 = sphi 0, %s119
      %s136 = sphi 0, %s120
      %s142 = sphi 0, %s144
      %s145 = sphi 0, %s142
      %s146 = sphi 0, %s145
      %s162 = sphi 0, %s146
      %s168 = sphi 0, %s170
      %s171 = sphi 0, %s168
      %s172 = sphi 0, %s171
      %s188 = sphi 0, %s172
      %s196 = sphi 0, %s198
      %s199 = sphi 0, %s196
      %s200 = sphi 0, %s199
      %s216 = sphi 0, %s200
      %s222 = sphi 0, %s224
      %s225 = sphi 0, %s222
      %s226 = sphi 0, %s225
      %s242 = sphi 0, %s226
    $region4: #{tpu_custom_call.1} parent=1 // loop_header_branch
      %29 = sbr.rel (%p27) target = $region8
    $region5: #{tpu_custom_call.1} parent=1 // loop_body
      %s31 = ssub.s32 %s26, 1
      %s32 = ssub.s32 %s26, 2
      %s39 = sadd.s32 1, %s34
      %p40 = scmp.ge.s32.totalorder %s39, 3
      %s41 = scalar_select %p40, 0, %s39
      %s42 = sadd.s32 1, %s33
      %s43 = scalar_select %p40, %s42, %s33
      %p44 = scmp.ge.s32.totalorder %s43, 3
      %s45 = scalar_select %p44, 0, %s43
      %s46 = ssub.s32 %s33, %s45
      %p47 = scmp.eq.s32.totalorder %s46, 0
      %s49 = sadd.s32 %s48, 1
      %s50 = scalar_select %p47, %s48, %s49
      %p53 = pneg %p47
      %p54 = scmp.eq.s32.totalorder %s26, 8
      %p55 = por %p53, %p54
      %p56 = scmp.ne.s32.totalorder %s48, %s51
      %p57 = scmp.eq.s32.totalorder %s26, 0
      %p58 = por %p56, %p57
      %p59 = scmp.ne.s32.totalorder %s48, %s51
      %p60 = scmp.eq.s32.totalorder %s31, 8
      %p61 = por %p59, %p60
      %p62 = scmp.ne.s32.totalorder %s51, %s52
      %p63 = scmp.eq.s32.totalorder %s31, 0
      %p64 = por %p62, %p63
      %p65 = scmp.ne.s32.totalorder %s51, %s52
      %p66 = scmp.eq.s32.totalorder %s32, 8
      %p67 = por %p65, %p66
      %p69 = scmp.ne.s32.totalorder %s52, %s68
      %p70 = scmp.eq.s32.totalorder %s32, 0
      %p71 = por %p69, %p70
      %s73 = sadd.s32 %s72, 1
      %p76 = scmp.eq.s32.totalorder %s26, 8
      %p77 = scmp.ne.s32.totalorder %s72, %s74
      %p78 = scmp.eq.s32.totalorder %s26, 0
      %p79 = por %p77, %p78
      %p80 = scmp.ne.s32.totalorder %s72, %s74
      %p81 = scmp.eq.s32.totalorder %s31, 8
      %p82 = por %p80, %p81
      %p83 = scmp.ne.s32.totalorder %s74, %s75
      %p84 = scmp.eq.s32.totalorder %s31, 0
      %p85 = por %p83, %p84
      %p86 = scmp.ne.s32.totalorder %s74, %s75
      %p87 = scmp.eq.s32.totalorder %s32, 8
      %p88 = por %p86, %p87
      %p90 = scmp.ne.s32.totalorder %s75, %s89
      %p91 = scmp.eq.s32.totalorder %s32, 0
      %p92 = por %p90, %p91
      %s94 = sadd.s32 %s93, 1
      %p97 = scmp.eq.s32.totalorder %s26, 8
      %p98 = scmp.ne.s32.totalorder %s93, %s95
      %p99 = scmp.eq.s32.totalorder %s26, 0
      %p100 = por %p98, %p99
      %p101 = scmp.ne.s32.totalorder %s93, %s95
      %p102 = scmp.eq.s32.totalorder %s31, 8
      %p103 = por %p101, %p102
      %p104 = scmp.ne.s32.totalorder %s95, %s96
      %p105 = scmp.eq.s32.totalorder %s31, 0
      %p106 = por %p104, %p105
      %p107 = scmp.ne.s32.totalorder %s95, %s96
      %p108 = scmp.eq.s32.totalorder %s32, 8
      %p109 = por %p107, %p108
      %p111 = scmp.ne.s32.totalorder %s96, %s110
      %p112 = scmp.eq.s32.totalorder %s32, 0
      %p113 = por %p111, %p112
      %s114 = ssub.s32 %s34, %s41
      %p115 = scmp.eq.s32.totalorder %s114, 0
      %s117 = sadd.s32 %s116, 1
      %s118 = scalar_select %p115, %s116, %s117
      %p121 = pneg %p115
      %p122 = scmp.eq.s32.totalorder %s26, 8
      %p123 = por %p121, %p122
      %p124 = scmp.ne.s32.totalorder %s116, %s119
      %p125 = scmp.eq.s32.totalorder %s26, 0
      %p126 = por %p124, %p125
      %p127 = scmp.ne.s32.totalorder %s116, %s119
      %p128 = scmp.eq.s32.totalorder %s31, 8
      %p129 = por %p127, %p128
      %p130 = scmp.ne.s32.totalorder %s119, %s120
      %p131 = scmp.eq.s32.totalorder %s31, 0
      %p132 = por %p130, %p131
      %p133 = scmp.ne.s32.totalorder %s119, %s120
      %p134 = scmp.eq.s32.totalorder %s32, 8
      %p135 = por %p133, %p134
      %p137 = scmp.ne.s32.totalorder %s120, %s136
      %p138 = scmp.eq.s32.totalorder %s32, 0
      %p139 = por %p137, %p138
      %s140 = ssub.s32 %s33, %s45
      %p141 = scmp.eq.s32.totalorder %s140, 0
      %s143 = sadd.s32 %s142, 1
      %s144 = scalar_select %p141, %s142, %s143
      %p147 = pneg %p141
      %p148 = scmp.eq.s32.totalorder %s26, 8
      %p149 = por %p147, %p148
      %p150 = scmp.ne.s32.totalorder %s142, %s145
      %p151 = scmp.eq.s32.totalorder %s26, 0
      %p152 = por %p150, %p151
      %p153 = scmp.ne.s32.totalorder %s142, %s145
      %p154 = scmp.eq.s32.totalorder %s31, 8
      %p155 = por %p153, %p154
      %p156 = scmp.ne.s32.totalorder %s145, %s146
      %p157 = scmp.eq.s32.totalorder %s31, 0
      %p158 = por %p156, %p157
      %p159 = scmp.ne.s32.totalorder %s145, %s146
      %p160 = scmp.eq.s32.totalorder %s32, 8
      %p161 = por %p159, %p160
      %p163 = scmp.ne.s32.totalorder %s146, %s162
      %p164 = scmp.eq.s32.totalorder %s32, 0
      %p165 = por %p163, %p164
      %s166 = ssub.s32 %s33, %s45
      %p167 = scmp.eq.s32.totalorder %s166, 0
      %s169 = sadd.s32 %s168, 1
      %s170 = scalar_select %p167, %s168, %s169
      %p173 = pneg %p167
      %p174 = scmp.eq.s32.totalorder %s26, 8
      %p175 = por %p173, %p174
      %p176 = scmp.ne.s32.totalorder %s168, %s171
      %p177 = scmp.eq.s32.totalorder %s26, 0
      %p178 = por %p176, %p177
      %p179 = scmp.ne.s32.totalorder %s168, %s171
      %p180 = scmp.eq.s32.totalorder %s31, 8
      %p181 = por %p179, %p180
      %p182 = scmp.ne.s32.totalorder %s171, %s172
      %p183 = scmp.eq.s32.totalorder %s31, 0
      %p184 = por %p182, %p183
      %p185 = scmp.ne.s32.totalorder %s171, %s172
      %p186 = scmp.eq.s32.totalorder %s32, 8
      %p187 = por %p185, %p186
      %p189 = scmp.ne.s32.totalorder %s172, %s188
      %p190 = scmp.eq.s32.totalorder %s32, 0
      %p191 = por %p189, %p190
      %s192 = ssub.s32 %s33, %s45
      %s193 = ssub.s32 %s34, %s41
      %s194 = sor.u32 %s192, %s193
      %p195 = scmp.eq.s32.totalorder %s194, 0
      %s197 = sadd.s32 %s196, 1
      %s198 = scalar_select %p195, %s196, %s197
      %p201 = pneg %p195
      %p202 = scmp.eq.s32.totalorder %s26, 8
      %p203 = por %p201, %p202
      %p204 = scmp.ne.s32.totalorder %s196, %s199
      %p205 = scmp.eq.s32.totalorder %s26, 0
      %p206 = por %p204, %p205
      %p207 = scmp.ne.s32.totalorder %s196, %s199
      %p208 = scmp.eq.s32.totalorder %s31, 8
      %p209 = por %p207, %p208
      %p210 = scmp.ne.s32.totalorder %s199, %s200
      %p211 = scmp.eq.s32.totalorder %s31, 0
      %p212 = por %p210, %p211
      %p213 = scmp.ne.s32.totalorder %s199, %s200
      %p214 = scmp.eq.s32.totalorder %s32, 8
      %p215 = por %p213, %p214
      %p217 = scmp.ne.s32.totalorder %s200, %s216
      %p218 = scmp.eq.s32.totalorder %s32, 0
      %p219 = por %p217, %p218
      %s220 = ssub.s32 %s33, %s45
      %p221 = scmp.eq.s32.totalorder %s220, 0
      %s223 = sadd.s32 %s222, 1
      %s224 = scalar_select %p221, %s222, %s223
      %p227 = pneg %p221
      %p228 = scmp.eq.s32.totalorder %s26, 8
      %p229 = por %p227, %p228
      %p230 = scmp.ne.s32.totalorder %s222, %s225
      %p231 = scmp.eq.s32.totalorder %s26, 0
      %p232 = por %p230, %p231
      %p233 = scmp.ne.s32.totalorder %s222, %s225
      %p234 = scmp.eq.s32.totalorder %s31, 8
      %p235 = por %p233, %p234
      %p236 = scmp.ne.s32.totalorder %s225, %s226
      %p237 = scmp.eq.s32.totalorder %s31, 0
      %p238 = por %p236, %p237
      %p239 = scmp.ne.s32.totalorder %s225, %s226
      %p240 = scmp.eq.s32.totalorder %s32, 8
      %p241 = por %p239, %p240
      %p243 = scmp.ne.s32.totalorder %s226, %s242
      %p244 = scmp.eq.s32.totalorder %s32, 0
      %p245 = por %p243, %p244
      %p246 = scmp.le.s32.totalorder 1, %s26
      %p247 = scmp.lt.s32.totalorder %s26, 10
      %p248 = pnand %p246, %p247
      %p249 = pneg %p248
      // Predicated region
      $region9: #{tpu_custom_call.1} parent=5 // pred_check
        _
      $region10: #{tpu_custom_call.1} parent=5 // pred_check_branch
        %251 = sbr.rel (%p248) target = $region12
      $region11: #{tpu_custom_call.1} parent=5 // pred_region
        %s252 = ssub.s32 %s26, 1
        // Predicated region
        $region13: #{tpu_custom_call.1} parent=11 // pred_check
          %p253 = pneg %p85
        $region14: #{tpu_custom_call.1} parent=11 // pred_check_branch
          %255 = sbr.rel (%p253) target = $region16
        $region15: #{tpu_custom_call.1} parent=11 // pred_region
          _
        $region16: #{tpu_custom_call.1} parent=11 // pred_fallthru
          _
        // Predicated region
        $region17: #{tpu_custom_call.1} parent=11 // pred_check
          %p256 = pneg %p106
        $region18: #{tpu_custom_call.1} parent=11 // pred_check_branch
          %258 = sbr.rel (%p256) target = $region20
        $region19: #{tpu_custom_call.1} parent=11 // pred_region
          _
        $region20: #{tpu_custom_call.1} parent=11 // pred_fallthru
          _
      $region12: #{tpu_custom_call.1} parent=5 // pred_fallthru
        _
      %p259 = scmp.lt.s32.totalorder %s26, 9
      // Predicated region
      $region21: #{tpu_custom_call.1} parent=5 // pred_check
        %p260 = pneg %p259
      $region22: #{tpu_custom_call.1} parent=5 // pred_check_branch
        %262 = sbr.rel (%p260) target = $region24
      $region23: #{tpu_custom_call.1} parent=5 // pred_region
        // Predicated region
        $region25: #{tpu_custom_call.1} parent=23 // pred_check
          %p263 = pneg %p58
        $region26: #{tpu_custom_call.1} parent=23 // pred_check_branch
          %265 = sbr.rel (%p263) target = $region28
        $region27: #{tpu_custom_call.1} parent=23 // pred_region
          %s266 = sand.u32 %s48, 1
          %s267 = scalar_lea.sflag [#allocation7], %s266
          %s268 = sand.u32 %s48, 1
          %s269 = smul.addr %s268, 4
          %s270 = scalar_lea.vmem [#allocation6], %s269
          %272 = vsyncadd %s267, 0
          %s273 = smul.addr %s33, 4
          %s274 = scalar_lea.hbm %s0, %s273
          %s276 = sshll.u32 %s274, 4
          %s277 = int_to_ptr.hbm [resolvable:$true] %s276
          %s278 = sshll.u32 %s270, 4
          %s279 = int_to_ptr.vmem [resolvable:$true] %s278
          %281 = dma.hbm_to_vmem [thread:$0]  %s277, 64, %s279, %s267
        $region28: #{tpu_custom_call.1} parent=23 // pred_fallthru
          _
        // Predicated region
        $region29: #{tpu_custom_call.1} parent=23 // pred_check
          %p282 = pneg %p126
        $region30: #{tpu_custom_call.1} parent=23 // pred_check_branch
          %284 = sbr.rel (%p282) target = $region32
        $region31: #{tpu_custom_call.1} parent=23 // pred_region
          %s285 = sand.u32 %s116, 1
          %s286 = scalar_lea.sflag [#allocation10], %s285
          %s287 = sand.u32 %s116, 1
          %s288 = smul.addr %s287, 16
          %s289 = scalar_lea.vmem [#allocation9], %s288
          %291 = vsyncadd %s286, 0
          %s292 = smul.addr %s34, 4
          %s293 = scalar_lea.hbm %s3, %s292
          %s294 = sshll.u32 %s293, 4
          %s295 = int_to_ptr.hbm [resolvable:$true] %s294
          %s296 = sshll.u32 %s289, 4
          %s297 = int_to_ptr.vmem [resolvable:$true] %s296
          %302 = dma.hbm_to_vmem [thread:$0]  %s295, 256, %s297, %s286, 192, 64, 4
        $region32: #{tpu_custom_call.1} parent=23 // pred_fallthru
          _
        // Predicated region
        $region33: #{tpu_custom_call.1} parent=23 // pred_check
          %p303 = pneg %p152
        $region34: #{tpu_custom_call.1} parent=23 // pred_check_branch
          %305 = sbr.rel (%p303) target = $region36
        $region35: #{tpu_custom_call.1} parent=23 // pred_region
          %p306 = scmp.lt.s32.totalorder %s33, 2
          %s307 = scalar_select %p306, %s33, 2
          %s308 = smul.addr %s307, 8
          %s309 = scalar_lea.vmem %s4, %s308
        $region36: #{tpu_custom_call.1} parent=23 // pred_fallthru
          _
      $region24: #{tpu_custom_call.1} parent=5 // pred_fallthru
        _
      %p310 = scmp.le.s32.totalorder 1, %s26
      %p311 = scmp.lt.s32.totalorder %s26, 10
      %p312 = pnand %p310, %p311
      %p313 = pneg %p312
      // Predicated region
      $region37: #{tpu_custom_call.1} parent=5 // pred_check
        _
      $region38: #{tpu_custom_call.1} parent=5 // pred_check_branch
        %315 = sbr.rel (%p312) target = $region40
      $region39: #{tpu_custom_call.1} parent=5 // pred_region
        %s316 = ssub.s32 %s26, 1
        %s317 = sand.u32 %s51, 1
        %s318 = scalar_lea.sflag [#allocation7], %s317
        %s319 = sand.u32 %s51, 1
        %s320 = smul.addr %s319, 4
        %s321 = scalar_lea.vmem [#allocation6], %s320
        // Predicated region
        $region41: #{tpu_custom_call.1} parent=39 // pred_check
          %p322 = pneg %p64
        $region42: #{tpu_custom_call.1} parent=39 // pred_check_branch
          %324 = sbr.rel (%p322) target = $region44
        $region43: #{tpu_custom_call.1} parent=39 // pred_region
          %326 = dma.done %s318, 64
        $region44: #{tpu_custom_call.1} parent=39 // pred_fallthru
          _
        %s327 = sand.u32 %s119, 1
        %s328 = scalar_lea.sflag [#allocation10], %s327
        %s329 = sand.u32 %s119, 1
        %s330 = smul.addr %s329, 16
        %s331 = scalar_lea.vmem [#allocation9], %s330
        // Predicated region
        $region45: #{tpu_custom_call.1} parent=39 // pred_check
          %p332 = pneg %p132
        $region46: #{tpu_custom_call.1} parent=39 // pred_check_branch
          %334 = sbr.rel (%p332) target = $region48
        $region47: #{tpu_custom_call.1} parent=39 // pred_region
          %336 = dma.done %s328, 256
        $region48: #{tpu_custom_call.1} parent=39 // pred_fallthru
          _
        %s337 = sand.u32 %s51, 1
        %s338 = scalar_lea.sflag [#allocation7], %s337
        %s339 = sand.u32 %s51, 1
        %s340 = smul.addr %s339, 4
        %s341 = scalar_lea.vmem [#allocation6], %s340
        %p342 = pneg %p64
        %p343 = pneg %p61
        %p344 = pneg %p85
        %p345 = pneg %p82
        %p346 = pneg %p106
        %p347 = pneg %p103
        %s348 = sand.u32 %s119, 1
        %s349 = scalar_lea.sflag [#allocation10], %s348
        %s350 = sand.u32 %s119, 1
        %s351 = smul.addr %s350, 16
        %s352 = scalar_lea.vmem [#allocation9], %s351
        %p353 = pneg %p132
        %p354 = pneg %p129
        %p355 = scmp.lt.s32.totalorder %s35, 2
        %s356 = scalar_select %p355, %s35, 2
        %s357 = smul.addr %s356, 8
        %s358 = scalar_lea.vmem %s4, %s357
        %p359 = pneg %p158
        %p360 = pneg %p155
        %p361 = pneg %p184
        %p362 = pneg %p181
        %s363 = sand.u32 %s171, 1
        %s364 = scalar_lea.sflag [#allocation8], %s363
        %s365 = sand.u32 %s171, 1
        %s366 = smul.addr %s365, 8
        %s367 = scalar_lea.vmem [#allocation11], %s366
        %p368 = pneg %p212
        %p369 = pneg %p209
        %s370 = sand.u32 %s199, 1
        %s371 = scalar_lea.sflag [#allocation13], %s370
        %s372 = sand.u32 %s199, 1
        %s373 = smul.addr %s372, 4
        %s374 = scalar_lea.vmem [#allocation12], %s373
        %p375 = pneg %p238
        %p376 = pneg %p235
        %p377 = scmp.lt.s32.totalorder %s35, 2
        %s378 = scalar_select %p377, %s35, 2
        %s379 = smul.addr %s378, 8
        %s380 = scalar_lea.vmem %s7, %s379
        %p381 = scmp.lt.s32.totalorder %s35, 2
        %s382 = scalar_select %p381, %s35, 2
        %s383 = smul.addr %s382, 8
        %s384 = scalar_lea.vmem %s4, %s383
        %p385 = scmp.lt.s32.totalorder %s35, 2
        %s386 = scalar_select %p385, %s35, 2
        %s387 = smul.addr %s386, 8
        %s388 = scalar_lea.vmem %s7, %s387
        %p390 = scmp.eq.s32.totalorder %s36, 0
        // Predicated region
        $region49: #{tpu_custom_call.1} parent=39 // pred_check
          %p391 = pneg %p390
        $region50: #{tpu_custom_call.1} parent=39 // pred_check_branch
          %393 = sbr.rel (%p391) target = $region52
        $region51: #{tpu_custom_call.1} parent=39 // pred_region
          %v394 = vld [vmem:[%s321] sm:$0xf]
          %v395 = vld [vmem:[%s1] sm:$0xf]
          %v396 = vld [vmem:[%s1 + $0x4] sm:$0xf]
          %v397 = vld [vmem:[%s1 + $0x8] sm:$0xf]
          %v398 = vld [vmem:[%s1 + $0xc] sm:$0xf]
          %v399 = vld [vmem:[%s2] sm:$0x1]
          %v401 = vperm.slane %v399, 0
          %v407 = vunpack.c.l.b16 %v395
          %v408 = vunpack.c.l.b16 %v396
          %v409 = vunpack.c.l.b16 %v397
          %v410 = vunpack.c.l.b16 %v398
          %v411 = vpack.c.b16 %v408, %v407
          %v412 = vpack.c.b16 %v410, %v409
          %vm415 = vcmask 261120
          %v417 = vsel %vm415, %v394, 0
          %419 = vmatpush.bf16.msra.mxu0 0
          %420 = vmatpush.bf16.msra.mxu0 0
          %421 = vmatpush.bf16.msra.mxu0 0
          %422 = vmatpush.bf16.msra.mxu0 0
          %423 = vmatpush.bf16.msra.mxu0 0
          %424 = vmatpush.bf16.msra.mxu0 0
          %425 = vmatpush.bf16.msra.mxu0 %v412
          %426 = vmatpush.bf16.msra.mxu0 %v411
          %427 = vmatmul.bf16.gmra.mxu0 %v417
          %v428 = vpop.f32.mrf.mxu0
          %v429 = vadd.f32 %v401, %v428
          %v430 = vpop.f32.mrf.mxu0
          %431 = vdwg.mxu0
          %v432 = vtanh.pop %v429
          %433 = vst.msk [vmem:[%s367] sm:$0xff] %vm415, %v432
          %v434 = vpack.c.bf16 %v432, %v432
          %vm435 = vcmask 257024
          %436 = vst.msk [vmem:[#allocation2] sm:$0xf] %vm435, %v434
          %vm437 = vcmask 7168
          %438 = vst.msk [vmem:[#allocation3] sm:$0xff] %vm437, -inf
          %439 = vst.msk [vmem:[#allocation4] sm:$0xff] %vm437, 0.0
          %440 = vst.msk [vmem:[#allocation5] sm:$0xff] %vm437, 0.0
        $region52: #{tpu_custom_call.1} parent=39 // pred_fallthru
          _
        %v441 = vld [vmem:[#allocation2] sm:$0xf]
        %v442 = vld [vmem:[%s331] sm:$0xf]
        %v443 = vld [vmem:[%s331 + $0x4] sm:$0xf]
        %v444 = vld [vmem:[%s331 + $0x8] sm:$0xf]
        %v445 = vld [vmem:[%s331 + $0xc] sm:$0xf]
        %v450 = vunpack.c.l.b16 %v442
        %v451 = vunpack.c.l.b16 %v443
        %v452 = vunpack.c.l.b16 %v444
        %v453 = vunpack.c.l.b16 %v445
        %v454 = vpack.c.b16 %v451, %v450
        %v455 = vpack.c.b16 %v453, %v452
        %vm458 = vcmask 261120
        %v460 = vsel %vm458, %v441, 0
        %462 = vmatpush.bf16.msra.mxu0 0
        %463 = vmatpush.bf16.msra.mxu0 0
        %464 = vmatpush.bf16.msra.mxu0 0
        %465 = vmatpush.bf16.msra.mxu0 0
        %466 = vmatpush.bf16.msra.mxu0 0
        %467 = vmatpush.bf16.msra.mxu0 0
        %468 = vmatpush.bf16.msra.mxu0 %v455
        %469 = vmatpush.bf16.msra.mxu0 %v454
        %470 = vmatmul.bf16.gmra.mxu0 %v460
        %v471 = vpop.f32.mrf.mxu0
        %v472 = vadd.f32 0.0, %v471
        %v473 = vpop.f32.mrf.mxu0
        %474 = vdwg.mxu0
        %v475 = vpack.c.bf16 %v472, %v472
        %476 = vst [vmem:[%s374] sm:$0xf] %v475
        %v477 = vlaneseq
        %v478 = vand.u32 %v477, 127
        %s479 = smul.u32 %s36, 128
        %v480 = vstv %s479
        %v481 = vadd.s32 %v478, %v480
        %vm482 = vcmp.lt.s32.totalorder %v481, 320
        %v483 = vsel %vm482, %v472, -inf
        %v484 = vld [vmem:[#allocation3] sm:$0xff]
        %485 = vmax.xlane.f32.xlu0 %v483
        %v486 = vpop.xlane.xlu0 %485
        %v487 = vmax.f32 %v484, %v486
        %v488 = vld [vmem:[#allocation4] sm:$0xff]
        %v489 = vsub.f32 %v484, %v487
        %v490 = vmul.f32 %v489, 1.442695
        %v491 = vpow.pop %v490
        %v492 = vmul.f32 %v488, %v491
        %494 = vset.pattern.permute.xlu0 0
        %495 = vperm.xlu0 %494, %v487
        %v496 = vpop.permute.xlu0 %495
        %v498 = vsub.f32 %v483, %v496
        %v499 = vmul.f32 %v498, 1.442695
        %v500 = vpow.pop %v499
        %501 = vadd.xlane.f32.xlu0 %v500
        %v502 = vpop.xlane.xlu0 %501
        %v503 = vadd.f32 %v492, %v502
        %vm504 = vcmask 7168
        %505 = vst.msk [vmem:[#allocation4] sm:$0xff] %vm504, %v503
        %506 = vst.msk [vmem:[#allocation3] sm:$0xff] %vm504, %v487
        %v507 = vld [vmem:[#allocation5] sm:$0xff]
        %v508 = vld [vmem:[%s384] sm:$0xff]
        %509 = vset.pattern.permute.xlu0 0
        %510 = vperm.xlu0 %509, %v508
        %v511 = vpop.permute.xlu0 %510
        %vm512 = vcmp.eq.s32.totalorder %v481, %v511
        %v513 = vsel %vm512, %v472, 0.0
        %514 = vadd.xlane.f32.xlu0 %v513
        %v515 = vpop.xlane.xlu0 %514
        %v516 = vadd.f32 %v507, %v515
        %517 = vst.msk [vmem:[#allocation5] sm:$0xff] %vm504, %v516
        %p518 = scmp.eq.s32.totalorder %s36, 2
        // Predicated region
        $region53: #{tpu_custom_call.1} parent=39 // pred_check
          %p519 = pneg %p518
        $region54: #{tpu_custom_call.1} parent=39 // pred_check_branch
          %521 = sbr.rel (%p519) target = $region56
        $region55: #{tpu_custom_call.1} parent=39 // pred_region
          %v522 = vld [vmem:[#allocation3] sm:$0xff]
          %v523 = vld [vmem:[#allocation4] sm:$0xff]
          %v524 = vlog2.pop %v523
          %v525 = vmul.f32 %v524, 0.6931472
          %v526 = vadd.f32 %v522, %v525
          %v527 = vld [vmem:[#allocation5] sm:$0xff]
          %v528 = vsub.f32 %v526, %v527
          %529 = vst.msk [vmem:[%s388] sm:$0xff] %vm504, %v528
        $region56: #{tpu_custom_call.1} parent=39 // pred_fallthru
          _
        %s530 = sand.u32 %s171, 1
        %s531 = scalar_lea.sflag [#allocation8], %s530
        %s532 = sand.u32 %s171, 1
        %s533 = smul.addr %s532, 8
        %s534 = scalar_lea.vmem [#allocation11], %s533
        %s535 = sand.u32 %s199, 1
        %s536 = scalar_lea.sflag [#allocation13], %s535
        %s537 = sand.u32 %s199, 1
        %s538 = smul.addr %s537, 4
        %s539 = scalar_lea.vmem [#allocation12], %s538
        %p540 = scmp.lt.s32.totalorder %s35, 2
        %s541 = scalar_select %p540, %s35, 2
        %s542 = smul.addr %s541, 8
        %s543 = scalar_lea.vmem %s7, %s542
        // Predicated region
        $region57: #{tpu_custom_call.1} parent=39 // pred_check
          %p544 = pneg %p181
        $region58: #{tpu_custom_call.1} parent=39 // pred_check_branch
          %546 = sbr.rel (%p544) target = $region60
        $region59: #{tpu_custom_call.1} parent=39 // pred_region
          %548 = vsyncadd %s531, 0
          %s549 = smul.addr %s35, 8
          %s550 = scalar_lea.hbm %s5, %s549
          %s552 = sshll.u32 %s534, 4
          %s553 = int_to_ptr.vmem [resolvable:$true] %s552
          %s554 = sshll.u32 %s550, 4
          %s555 = int_to_ptr.hbm [resolvable:$true] %s554
          %557 = dma.vmem_to_hbm [thread:$0]  %s553, 128, %s555, %s531
        $region60: #{tpu_custom_call.1} parent=39 // pred_fallthru
          _
        // Predicated region
        $region61: #{tpu_custom_call.1} parent=39 // pred_check
          %p558 = pneg %p209
        $region62: #{tpu_custom_call.1} parent=39 // pred_check_branch
          %560 = sbr.rel (%p558) target = $region64
        $region63: #{tpu_custom_call.1} parent=39 // pred_region
          %562 = vsyncadd %s536, 0
          %s563 = smul.addr %s35, 3
          %s564 = sadd.s32 %s36, %s563
          %s565 = smul.addr %s564, 4
          %s566 = scalar_lea.hbm %s6, %s565
          %s568 = sshll.u32 %s539, 4
          %s569 = int_to_ptr.vmem [resolvable:$true] %s568
          %s570 = sshll.u32 %s566, 4
          %s571 = int_to_ptr.hbm [resolvable:$true] %s570
          %573 = dma.vmem_to_hbm [thread:$0]  %s569, 64, %s571, %s536
        $region64: #{tpu_custom_call.1} parent=39 // pred_fallthru
          _
        // Predicated region
        $region65: #{tpu_custom_call.1} parent=39 // pred_check
          %p574 = pneg %p235
        $region66: #{tpu_custom_call.1} parent=39 // pred_check_branch
          %576 = sbr.rel (%p574) target = $region68
        $region67: #{tpu_custom_call.1} parent=39 // pred_region
          _
        $region68: #{tpu_custom_call.1} parent=39 // pred_fallthru
          _
      $region40: #{tpu_custom_call.1} parent=5 // pred_fallthru
        _
      %p577 = scmp.le.s32.totalorder 2, %s26
      // Predicated region
      $region69: #{tpu_custom_call.1} parent=5 // pred_check
        %p578 = pneg %p577
      $region70: #{tpu_custom_call.1} parent=5 // pred_check_branch
        %580 = sbr.rel (%p578) target = $region72
      $region71: #{tpu_custom_call.1} parent=5 // pred_region
        %s581 = ssub.s32 %s26, 2
        // Predicated region
        $region73: #{tpu_custom_call.1} parent=71 // pred_check
          %p582 = pneg %p187
        $region74: #{tpu_custom_call.1} parent=71 // pred_check_branch
          %584 = sbr.rel (%p582) target = $region76
        $region75: #{tpu_custom_call.1} parent=71 // pred_region
          %s585 = sand.u32 %s172, 1
          %s586 = scalar_lea.sflag [#allocation8], %s585
          %s587 = sand.u32 %s172, 1
          %s588 = smul.addr %s587, 8
          %s589 = scalar_lea.vmem [#allocation11], %s588
          %591 = dma.done %s586, 128
        $region76: #{tpu_custom_call.1} parent=71 // pred_fallthru
          _
        // Predicated region
        $region77: #{tpu_custom_call.1} parent=71 // pred_check
          %p592 = pneg %p215
        $region78: #{tpu_custom_call.1} parent=71 // pred_check_branch
          %594 = sbr.rel (%p592) target = $region80
        $region79: #{tpu_custom_call.1} parent=71 // pred_region
          %s595 = sand.u32 %s200, 1
          %s596 = scalar_lea.sflag [#allocation13], %s595
          %s597 = sand.u32 %s200, 1
          %s598 = smul.addr %s597, 4
          %s599 = scalar_lea.vmem [#allocation12], %s598
          %601 = dma.done %s596, 64
        $region80: #{tpu_custom_call.1} parent=71 // pred_fallthru
          _
        // Predicated region
        $region81: #{tpu_custom_call.1} parent=71 // pred_check
          %p602 = pneg %p241
        $region82: #{tpu_custom_call.1} parent=71 // pred_check_branch
          %604 = sbr.rel (%p602) target = $region84
        $region83: #{tpu_custom_call.1} parent=71 // pred_region
          %p605 = scmp.lt.s32.totalorder %s37, 2
          %s606 = scalar_select %p605, %s37, 2
          %s607 = smul.addr %s606, 8
          %s608 = scalar_lea.vmem %s7, %s607
        $region84: #{tpu_custom_call.1} parent=71 // pred_fallthru
          _
      $region72: #{tpu_custom_call.1} parent=5 // pred_fallthru
        _
    $region6: #{tpu_custom_call.1} parent=1 // loop_footer
      %s30 = sadd.s32 1, %s26
    $region7: #{tpu_custom_call.1} parent=1 // loop_footer_branch
      %25 = sbr.rel target = $region3
    $region8: #{tpu_custom_call.1} parent=1 // loop_exit
      _
    %609 = vsyncpa [#allocation7], 1
    %s610 = scalar_lea.sflag [#allocation7], 1
    %611 = vsyncpa %s610, 1
    %612 = vsyncpa [#allocation10], 1
    %s613 = scalar_lea.sflag [#allocation10], 1
    %614 = vsyncpa %s613, 1
    %615 = vsyncpa [#allocation8], 1
    %s616 = scalar_lea.sflag [#allocation8], 1
    %617 = vsyncpa %s616, 1
    %618 = vsyncpa [#allocation13], 1
    %s619 = scalar_lea.sflag [#allocation13], 1
    %620 = vsyncpa %s619, 1

</llo_original>
